<compile_context>
chip_gen: v6e
topology: v6e:2x2x1
jax: 0.10.0
libtpu: 0.0.40
codegen_flags: <defaults>
</compile_context>

<pallas_src>
import jax
import jax.numpy as jnp
from jax import lax
from jax.experimental import pallas as pl
from jax.experimental.pallas import tpu as pltpu

# ---- config (small, consistent with the module) ----
B = 8              # rows of x == attention sequence length
D = 32             # block_size == per-row feature dim
N_HEAD = 4
N_KV_HEAD = 2
HEAD_DIM = 16
HIDDEN = 64
REPEATS = N_HEAD // N_KV_HEAD
EPS = 1e-6
SCALE = HEAD_DIM ** -0.5
HALF = HEAD_DIM // 2

QW = N_HEAD * HEAD_DIM          # 64
KW = N_KV_HEAD * HEAD_DIM       # 32
# rotated-qkv lane layout (after the single RoPE FMA): [ q(64) | k(32) | v(32) ]
OFF_Q, OFF_K, OFF_V = 0, QW, QW + KW
FUSED_HALF = QW + 2 * KW        # 128: width of rotated qkv / of each table half
FUSED_W = 2 * FUSED_HALF        # 256: fused QKV(+swapped) matmul output width


def transformer_block_kernel(x_ref, rope_ref, wqkv_ref, w13_ref, wo2_ref,
                             o_ref, ho_ref):
    x = x_ref[...].astype(jnp.float32)                              # (B, D)

    def rmsnorm(v):                       # gains are folded into the weights
        ms = jnp.mean(v * v, axis=-1, keepdims=True)
        return v * lax.rsqrt(ms + EPS)

    # ---------------- attention ----------------
    xa = rmsnorm(x)                                                 # (B, D) f32
    # single fused 256-lane QKV(+swapped) projection; bf16 MXU, f32 acc
    y = jnp.dot(xa.astype(jnp.bfloat16), wqkv_ref[...],
                preferred_element_type=jnp.float32)                 # (B, 256)
    # RoPE + softmax-scale + v pass-through as ONE 128-lane fused mul-add:
    #   qkv = y[:, :128] * C + y[:, 128:] * S
    qkv = (y[:, :FUSED_HALF] * rope_ref[:, :FUSED_HALF]
           + y[:, FUSED_HALF:] * rope_ref[:, FUSED_HALF:])          # (B, 128) f32
    q = qkv[:, OFF_Q:OFF_Q + QW]          # (B, 64) -- already * head_dim**-0.5
    k = qkv[:, OFF_K:OFF_K + KW]          # (B, 32)
    v = qkv[:, OFF_V:OFF_V + KW]          # (B, 32)

    wo = wo2_ref[:QW, :]                  # (64, 32) bf16
    w2 = wo2_ref[QW:, :]                  # (64, 32) bf16

    dn = (((1,), (1,)), ((), ()))         # contract last dims (no transpose)
    # GQA: the REPEATS query heads sharing each KV head are sublane-stacked into
    # one (REPEATS*B, hd) tile -> 2 score matmuls / softmaxes / P.V matmuls
    # instead of 4 each.  Static loop keeps the chains head-independent so the
    # LLO scheduler can interleave them.
    for kv in range(N_KV_HEAD):
        q_stk = jnp.concatenate(
            [q[:, (kv * REPEATS + r) * HEAD_DIM:(kv * REPEATS + r + 1) * HEAD_DIM]
             for r in range(REPEATS)], axis=0)                      # (R*B, hd)
        kh = k[:, kv * HEAD_DIM:(kv + 1) * HEAD_DIM]                # (B, hd)
        vh = v[:, kv * HEAD_DIM:(kv + 1) * HEAD_DIM]                # (B, hd)
        s = lax.dot_general(q_stk, kh, dn,
                            preferred_element_type=jnp.float32)     # (R*B, B)
        s = s - jnp.max(s, axis=-1, keepdims=True)
        p = jnp.exp(s)                                              # f32
        p = p * pl.reciprocal(jnp.sum(p, axis=-1, keepdims=True), approx=True)
        pv = jnp.dot(p, vh, preferred_element_type=jnp.float32)     # (R*B, hd)
        # un-stack into static 16-lane offsets of the (B, 64) scratch (vst slots)
        for r in range(REPEATS):
            col = (kv * REPEATS + r) * HEAD_DIM
            ho_ref[:, col:col + HEAD_DIM] = pv[r * B:(r + 1) * B, :]
    # ONE (8,64)@(64,32) output projection instead of 4 accumulating dots
    r_attn = jnp.dot(ho_ref[...].astype(jnp.bfloat16), wo,
                     preferred_element_type=jnp.float32)            # (B, D)
    h = x + r_attn

    # ---------------- SwiGLU feed-forward (w1|w3 fused, gain folded) ----------
    xf = rmsnorm(h)
    y2 = jnp.dot(xf.astype(jnp.bfloat16), w13_ref[...],
                 preferred_element_type=jnp.float32)                # (B, 2*HIDDEN)
    a = y2[:, :HIDDEN]
    b = y2[:, HIDDEN:]
    g = a * jax.nn.sigmoid(a) * b                                   # SiLU(a)*b, f32
    ff = jnp.dot(g.astype(jnp.bfloat16), w2,
                 preferred_element_type=jnp.float32)                # (B, D)
    o_ref[...] = (h + ff).astype(o_ref.dtype)


# ---------------- one-time host-side preprocessing (outside the jitted fwd) ----
def _permute_cols(w, n_heads, swap):
    """Reorder output columns per head from interleaved (r0,i0,r1,i1,...) to
    [r...|i...] (or [i...|r...] when swap=True)."""
    re = jnp.arange(0, HEAD_DIM, 2)
    im = jnp.arange(1, HEAD_DIM, 2)
    perm = jnp.concatenate([im, re] if swap else [re, im])
    cols = jnp.concatenate([perm + h * HEAD_DIM for h in range(n_heads)])
    return w[:, cols]


def prepare_weights(wq, wk, wv, wo, w1, w2, w3, ga, gf):
    """Permute+fuse projections, fold RMSNorm gains (row scaling), cast to bf16."""
    wq_p = _permute_cols(wq, N_HEAD, swap=False)
    wq_s = _permute_cols(wq, N_HEAD, swap=True)
    wk_p = _permute_cols(wk, N_KV_HEAD, swap=False)
    wk_s = _permute_cols(wk, N_KV_HEAD, swap=True)
    pad = jnp.zeros((D, FUSED_W - (2 * QW + 3 * KW)), wq.dtype)
    # fused layout: [ q(64) | k(32) | v(32) | q_swapped(64) | k_swapped(32) | pad(32) ]
    wqkv = jnp.concatenate([wq_p, wk_p, wv, wq_s, wk_s, pad], axis=1)   # (D, 256)
    wqkv = ga.reshape(D, 1) * wqkv              # fold attention-norm gain (exact)
    w13 = gf.reshape(D, 1) * jnp.concatenate([w1, w3], axis=1)          # (D, 128)
    wo2 = jnp.concatenate([wo, w2], axis=0)                             # (128, D)
    cast = lambda w: w.astype(jnp.bfloat16)
    return cast(wqkv), cast(w13), cast(wo2)


def prepare_rope(cos, sin):
    """One packed (B, 256) rope table [C | S] with
       C = [cos-tile(q)*scale | cos-tile(k) | ones(v)],
       S = [sin-tile(q)*scale | sin-tile(k) | zeros(v)].
    The softmax scale head_dim**-0.5 is folded into the q columns."""
    rows = cos.shape[0]
    cc = jnp.concatenate([cos, cos], axis=-1)        # per-head [cos | cos]
    ss = jnp.concatenate([-sin, sin], axis=-1)       # per-head [-sin | sin]
    cq = jnp.tile(cc, (1, N_HEAD)) * SCALE
    sq = jnp.tile(ss, (1, N_HEAD)) * SCALE
    ck = jnp.tile(cc, (1, N_KV_HEAD))
    sk = jnp.tile(ss, (1, N_KV_HEAD))
    ones = jnp.ones((rows, KW), jnp.float32)
    zeros = jnp.zeros((rows, KW), jnp.float32)
    ctab = jnp.concatenate([cq, ck, ones], axis=1)   # (B, 128)
    stab = jnp.concatenate([sq, sk, zeros], axis=1)  # (B, 128)
    return jnp.concatenate([ctab, stab], axis=1)     # (B, 256)


@jax.jit
def transformer_block(x, rope_tab, wqkv, w13, wo2):
    vmem = lambda: pl.BlockSpec(memory_space=pltpu.MemorySpace.VMEM)
    # TODO(synk): at production sizes add a token/sequence grid with
    # dimension_semantics=("parallel", ...) (v7x has 2 TCs), keep the weight
    # BlockSpecs' index_maps constant (lambda *i: (0, 0)) so weights stay
    # VMEM-resident, use >=128/256-row LHS blocks and a lane-dense
    # (multiple-of-128) output slab, and re-derive tiles for v7x's 64 MiB VMEM.
    # At (8,32) a single grid-less invocation is optimal.
    return pl.pallas_call(
        transformer_block_kernel,
        out_shape=jax.ShapeDtypeStruct(x.shape, x.dtype),
        in_specs=[vmem() for _ in range(5)],
        out_specs=vmem(),
        scratch_shapes=[pltpu.VMEM((B, QW), jnp.float32)],   # (8,64) head-out slab
    )(x, rope_tab, wqkv, w13, wo2)


# ---------------- pure-JAX reference (matches the PyTorch math) ----------------
def reference(x, cos, sin, wq, wk, wv, wo, w1, w2, w3, ga, gf):
    def rmsnorm(v, g):
        ms = jnp.mean(v * v, axis=-1, keepdims=True)
        return v * lax.rsqrt(ms + EPS) * g

    xa = rmsnorm(x, ga)
    q = (xa @ wq).reshape(B, N_HEAD, HEAD_DIM)
    k = (xa @ wk).reshape(B, N_KV_HEAD, HEAD_DIM)
    v = (xa @ wv).reshape(B, N_KV_HEAD, HEAD_DIM)

    def rope_interleaved(t):
        tr, ti = t[..., 0::2], t[..., 1::2]
        c, s = cos[:, None, :], sin[:, None, :]
        return jnp.stack([tr * c - ti * s, tr * s + ti * c], axis=-1).reshape(t.shape)

    q = rope_interleaved(q)
    k = jnp.repeat(rope_interleaved(k), REPEATS, axis=1)
    v = jnp.repeat(v, REPEATS, axis=1)
    s = jnp.einsum('qhd,khd->hqk', q, k) * SCALE
    p = jax.nn.softmax(s, axis=-1)
    o = jnp.einsum('hqk,khd->qhd', p, v).reshape(B, N_HEAD * HEAD_DIM)
    h = x + o @ wo
    xf = rmsnorm(h, gf)
    ff = (jax.nn.silu(xf @ w1) * (xf @ w3)) @ w2
    return h + ff


if __name__ == "__main__":
    key = jax.random.PRNGKey(0)
    ks = jax.random.split(key, 12)

    x = jax.random.normal(ks[0], (B, D), jnp.float32)
    angles = jax.random.uniform(ks[1], (B, HALF), jnp.float32, 0.0, 6.28)
    cos, sin = jnp.cos(angles), jnp.sin(angles)

    init = lambda k, shape: 0.05 * jax.random.normal(k, shape, jnp.float32)
    # weights stored in bf16 (MXU-native); the f32 reference uses the same
    # bf16-rounded values so the comparison is apples-to-apples.
    bf16_round = lambda w: w.astype(jnp.bfloat16).astype(jnp.float32)
    wq = bf16_round(init(ks[2], (D, N_HEAD * HEAD_DIM)))
    wk = bf16_round(init(ks[3], (D, N_KV_HEAD * HEAD_DIM)))
    wv = bf16_round(init(ks[4], (D, N_KV_HEAD * HEAD_DIM)))
    wo = bf16_round(init(ks[5], (N_HEAD * HEAD_DIM, D)))
    w1 = bf16_round(init(ks[6], (D, HIDDEN)))
    w2 = bf16_round(init(ks[7], (HIDDEN, D)))
    w3 = bf16_round(init(ks[8], (D, HIDDEN)))
    ga = 1.0 + 0.1 * jax.random.normal(ks[9], (1, D), jnp.float32)
    gf = 1.0 + 0.1 * jax.random.normal(ks[10], (1, D), jnp.float32)

    # one-time preprocessing (gain / scale folds, fusion, packing) outside the fwd
    wqkv_b, w13_b, wo2_b = prepare_weights(wq, wk, wv, wo, w1, w2, w3, ga, gf)
    rope_tab = prepare_rope(cos, sin)

    out = transformer_block(x, rope_tab, wqkv_b, w13_b, wo2_b)
    out = jax.block_until_ready(out)

    ref = reference(x, cos, sin, wq, wk, wv, wo, w1, w2, w3, ga[0], gf[0])
    assert out.shape == (B, D) and out.dtype == jnp.float32
    max_err = float(jnp.max(jnp.abs(out - ref)))
    assert jnp.allclose(out, ref, atol=1e-2, rtol=1e-2), max_err

    # TODO(synk): KV-cache branches (prefill / sliding-window decode, cache.mask)
    # and the MoE (use_moe=True) routing branch are not implemented; only the
    # cache=None FeedForward path of the module is covered.
    print("KERNEL_OK")
</pallas_src>

<mosaic_0001>
module attributes {stable_mosaic.version = 11 : i64} {
  func.func @transformer_block_kernel(%arg0: memref<8x32xf32, #tpu.memory_space<vmem>>, %arg1: memref<8x256xf32, #tpu.memory_space<vmem>>, %arg2: memref<32x256xbf16, #tpu.memory_space<vmem>>, %arg3: memref<32x128xbf16, #tpu.memory_space<vmem>>, %arg4: memref<128x32xbf16, #tpu.memory_space<vmem>>, %arg5: memref<8x32xf32, #tpu.memory_space<vmem>>, %arg6: memref<8x64xf32, #tpu.memory_space<vmem>>) attributes {dimension_semantics = [], scalar_prefetch = 0 : i64, scratch_operands = 1 : i64, tpu.core_type = #tpu.core_type<tc>} {
    %c0 = arith.constant 0 : index
    %c0_0 = arith.constant 0 : index
    %0 = vector.load %arg0[%c0, %c0_0] : memref<8x32xf32, #tpu.memory_space<vmem>>, vector<8x32xf32>
    %1 = arith.mulf %0, %0 : vector<8x32xf32>
    %cst = arith.constant dense<0.000000e+00> : vector<8xf32>
    %2 = vector.multi_reduction <add>, %1, %cst [1] : vector<8x32xf32> to vector<8xf32>
    %3 = vector.shape_cast %2 : vector<8xf32> to vector<8x1xf32>
    %cst_1 = arith.constant 3.200000e+01 : f32
    %4 = vector.broadcast %cst_1 : f32 to vector<8x1xf32>
    %5 = arith.divf %3, %4 : vector<8x1xf32>
    %cst_2 = arith.constant 9.99999997E-7 : f32
    %6 = vector.broadcast %cst_2 : f32 to vector<8x1xf32>
    %7 = arith.addf %5, %6 : vector<8x1xf32>
    %8 = math.rsqrt %7 : vector<8x1xf32>
    %9 = vector.broadcast %8 : vector<8x1xf32> to vector<8x32xf32>
    %10 = arith.mulf %0, %9 : vector<8x32xf32>
    %11 = arith.truncf %10 : vector<8x32xf32> to vector<8x32xbf16>
    %c0_3 = arith.constant 0 : index
    %c0_4 = arith.constant 0 : index
    %12 = vector.load %arg2[%c0_3, %c0_4] : memref<32x256xbf16, #tpu.memory_space<vmem>>, vector<32x256xbf16>
    %cst_5 = arith.constant dense<0.000000e+00> : vector<8x256xf32>
    %13 = tpu.matmul %11, %12, %cst_5 {dimension_numbers = #tpu.dot_dimension_numbers<[1], [0], [0], [1], [0, 0, 1, 1], [], []>} : vector<8x32xbf16>, vector<32x256xbf16>, vector<8x256xf32> -> vector<8x256xf32>
    %14 = vector.extract_strided_slice %13 {offsets = [0, 0], sizes = [8, 128], strides = [1, 1]} : vector<8x256xf32> to vector<8x128xf32>
    %c0_6 = arith.constant 0 : index
    %c0_7 = arith.constant 0 : index
    %15 = vector.load %arg1[%c0_6, %c0_7] : memref<8x256xf32, #tpu.memory_space<vmem>>, vector<8x128xf32>
    %16 = arith.mulf %14, %15 : vector<8x128xf32>
    %17 = vector.extract_strided_slice %13 {offsets = [0, 128], sizes = [8, 128], strides = [1, 1]} : vector<8x256xf32> to vector<8x128xf32>
    %c0_8 = arith.constant 0 : index
    %c128 = arith.constant 128 : index
    %18 = vector.load %arg1[%c0_8, %c128] : memref<8x256xf32, #tpu.memory_space<vmem>>, vector<8x128xf32>
    %19 = arith.mulf %17, %18 : vector<8x128xf32>
    %20 = arith.addf %16, %19 : vector<8x128xf32>
    %21 = vector.extract_strided_slice %20 {offsets = [0, 0], sizes = [8, 64], strides = [1, 1]} : vector<8x128xf32> to vector<8x64xf32>
    %22 = vector.extract_strided_slice %20 {offsets = [0, 64], sizes = [8, 32], strides = [1, 1]} : vector<8x128xf32> to vector<8x32xf32>
    %23 = vector.extract_strided_slice %20 {offsets = [0, 96], sizes = [8, 32], strides = [1, 1]} : vector<8x128xf32> to vector<8x32xf32>
    %c0_9 = arith.constant 0 : index
    %c0_10 = arith.constant 0 : index
    %24 = vector.load %arg4[%c0_9, %c0_10] : memref<128x32xbf16, #tpu.memory_space<vmem>>, vector<64x32xbf16>
    %c64 = arith.constant 64 : index
    %c0_11 = arith.constant 0 : index
    %25 = vector.load %arg4[%c64, %c0_11] : memref<128x32xbf16, #tpu.memory_space<vmem>>, vector<64x32xbf16>
    %26 = vector.extract_strided_slice %21 {offsets = [0, 0], sizes = [8, 16], strides = [1, 1]} : vector<8x64xf32> to vector<8x16xf32>
    %27 = vector.extract_strided_slice %21 {offsets = [0, 16], sizes = [8, 16], strides = [1, 1]} : vector<8x64xf32> to vector<8x16xf32>
    %28 = tpu.concatenate %26, %27 in 0 : vector<8x16xf32>, vector<8x16xf32> -> vector<16x16xf32>
    %29 = vector.extract_strided_slice %22 {offsets = [0, 0], sizes = [8, 16], strides = [1, 1]} : vector<8x32xf32> to vector<8x16xf32>
    %30 = vector.extract_strided_slice %23 {offsets = [0, 0], sizes = [8, 16], strides = [1, 1]} : vector<8x32xf32> to vector<8x16xf32>
    %cst_12 = arith.constant dense<0.000000e+00> : vector<16x8xf32>
    %31 = tpu.matmul %28, %29, %cst_12 {dimension_numbers = #tpu.dot_dimension_numbers<[1], [1], [0], [0], [0, 0, 1, 0], [], []>} : vector<16x16xf32>, vector<8x16xf32>, vector<16x8xf32> -> vector<16x8xf32>
    %cst_13 = arith.constant dense<0xFF800000> : vector<16xf32>
    %32 = vector.multi_reduction <maximumf>, %31, %cst_13 [1] : vector<16x8xf32> to vector<16xf32>
    %33 = vector.shape_cast %32 : vector<16xf32> to vector<16x1xf32>
    %34 = vector.broadcast %33 : vector<16x1xf32> to vector<16x8xf32>
    %35 = arith.subf %31, %34 : vector<16x8xf32>
    %36 = math.exp %35 : vector<16x8xf32>
    %cst_14 = arith.constant dense<0.000000e+00> : vector<16xf32>
    %37 = vector.multi_reduction <add>, %36, %cst_14 [1] : vector<16x8xf32> to vector<16xf32>
    %38 = vector.shape_cast %37 : vector<16xf32> to vector<16x1xf32>
    %39 = tpu.reciprocal %38 {approx = true} : vector<16x1xf32> -> vector<16x1xf32>
    %40 = vector.broadcast %39 : vector<16x1xf32> to vector<16x8xf32>
    %41 = arith.mulf %36, %40 : vector<16x8xf32>
    %cst_15 = arith.constant dense<0.000000e+00> : vector<16x16xf32>
    %42 = tpu.matmul %41, %30, %cst_15 {dimension_numbers = #tpu.dot_dimension_numbers<[1], [0], [0], [1], [0, 0, 1, 1], [], []>} : vector<16x8xf32>, vector<8x16xf32>, vector<16x16xf32> -> vector<16x16xf32>
    %43 = vector.extract_strided_slice %42 {offsets = [0, 0], sizes = [8, 16], strides = [1, 1]} : vector<16x16xf32> to vector<8x16xf32>
    %c0_16 = arith.constant 0 : index
    %c0_17 = arith.constant 0 : index
    %44 = vector.load %arg6[%c0_16, %c0_17] : memref<8x64xf32, #tpu.memory_space<vmem>>, vector<8x16xf32>
    tpu.vector_store %arg6[%c0_16, %c0_17], %43 {strides = array<i32>} : memref<8x64xf32, #tpu.memory_space<vmem>>, vector<8x16xf32>,
    %45 = vector.extract_strided_slice %42 {offsets = [8, 0], sizes = [8, 16], strides = [1, 1]} : vector<16x16xf32> to vector<8x16xf32>
    %c0_18 = arith.constant 0 : index
    %c16 = arith.constant 16 : index
    %46 = vector.load %arg6[%c0_18, %c16] : memref<8x64xf32, #tpu.memory_space<vmem>>, vector<8x16xf32>
    tpu.vector_store %arg6[%c0_18, %c16], %45 {strides = array<i32>} : memref<8x64xf32, #tpu.memory_space<vmem>>, vector<8x16xf32>,
    %47 = vector.extract_strided_slice %21 {offsets = [0, 32], sizes = [8, 16], strides = [1, 1]} : vector<8x64xf32> to vector<8x16xf32>
    %48 = vector.extract_strided_slice %21 {offsets = [0, 48], sizes = [8, 16], strides = [1, 1]} : vector<8x64xf32> to vector<8x16xf32>
    %49 = tpu.concatenate %47, %48 in 0 : vector<8x16xf32>, vector<8x16xf32> -> vector<16x16xf32>
    %50 = vector.extract_strided_slice %22 {offsets = [0, 16], sizes = [8, 16], strides = [1, 1]} : vector<8x32xf32> to vector<8x16xf32>
    %51 = vector.extract_strided_slice %23 {offsets = [0, 16], sizes = [8, 16], strides = [1, 1]} : vector<8x32xf32> to vector<8x16xf32>
    %cst_19 = arith.constant dense<0.000000e+00> : vector<16x8xf32>
    %52 = tpu.matmul %49, %50, %cst_19 {dimension_numbers = #tpu.dot_dimension_numbers<[1], [1], [0], [0], [0, 0, 1, 0], [], []>} : vector<16x16xf32>, vector<8x16xf32>, vector<16x8xf32> -> vector<16x8xf32>
    %cst_20 = arith.constant dense<0xFF800000> : vector<16xf32>
    %53 = vector.multi_reduction <maximumf>, %52, %cst_20 [1] : vector<16x8xf32> to vector<16xf32>
    %54 = vector.shape_cast %53 : vector<16xf32> to vector<16x1xf32>
    %55 = vector.broadcast %54 : vector<16x1xf32> to vector<16x8xf32>
    %56 = arith.subf %52, %55 : vector<16x8xf32>
    %57 = math.exp %56 : vector<16x8xf32>
    %cst_21 = arith.constant dense<0.000000e+00> : vector<16xf32>
    %58 = vector.multi_reduction <add>, %57, %cst_21 [1] : vector<16x8xf32> to vector<16xf32>
    %59 = vector.shape_cast %58 : vector<16xf32> to vector<16x1xf32>
    %60 = tpu.reciprocal %59 {approx = true} : vector<16x1xf32> -> vector<16x1xf32>
    %61 = vector.broadcast %60 : vector<16x1xf32> to vector<16x8xf32>
    %62 = arith.mulf %57, %61 : vector<16x8xf32>
    %cst_22 = arith.constant dense<0.000000e+00> : vector<16x16xf32>
    %63 = tpu.matmul %62, %51, %cst_22 {dimension_numbers = #tpu.dot_dimension_numbers<[1], [0], [0], [1], [0, 0, 1, 1], [], []>} : vector<16x8xf32>, vector<8x16xf32>, vector<16x16xf32> -> vector<16x16xf32>
    %64 = vector.extract_strided_slice %63 {offsets = [0, 0], sizes = [8, 16], strides = [1, 1]} : vector<16x16xf32> to vector<8x16xf32>
    %c0_23 = arith.constant 0 : index
    %c32 = arith.constant 32 : index
    %65 = vector.load %arg6[%c0_23, %c32] : memref<8x64xf32, #tpu.memory_space<vmem>>, vector<8x16xf32>
    tpu.vector_store %arg6[%c0_23, %c32], %64 {strides = array<i32>} : memref<8x64xf32, #tpu.memory_space<vmem>>, vector<8x16xf32>,
    %66 = vector.extract_strided_slice %63 {offsets = [8, 0], sizes = [8, 16], strides = [1, 1]} : vector<16x16xf32> to vector<8x16xf32>
    %c0_24 = arith.constant 0 : index
    %c48 = arith.constant 48 : index
    %67 = vector.load %arg6[%c0_24, %c48] : memref<8x64xf32, #tpu.memory_space<vmem>>, vector<8x16xf32>
    tpu.vector_store %arg6[%c0_24, %c48], %66 {strides = array<i32>} : memref<8x64xf32, #tpu.memory_space<vmem>>, vector<8x16xf32>,
    %c0_25 = arith.constant 0 : index
    %c0_26 = arith.constant 0 : index
    %68 = vector.load %arg6[%c0_25, %c0_26] : memref<8x64xf32, #tpu.memory_space<vmem>>, vector<8x64xf32>
    %69 = arith.truncf %68 : vector<8x64xf32> to vector<8x64xbf16>
    %cst_27 = arith.constant dense<0.000000e+00> : vector<8x32xf32>
    %70 = tpu.matmul %69, %24, %cst_27 {dimension_numbers = #tpu.dot_dimension_numbers<[1], [0], [0], [1], [0, 0, 1, 1], [], []>} : vector<8x64xbf16>, vector<64x32xbf16>, vector<8x32xf32> -> vector<8x32xf32>
    %71 = arith.addf %0, %70 : vector<8x32xf32>
    %72 = arith.mulf %71, %71 : vector<8x32xf32>
    %cst_28 = arith.constant dense<0.000000e+00> : vector<8xf32>
    %73 = vector.multi_reduction <add>, %72, %cst_28 [1] : vector<8x32xf32> to vector<8xf32>
    %74 = vector.shape_cast %73 : vector<8xf32> to vector<8x1xf32>
    %cst_29 = arith.constant 3.200000e+01 : f32
    %75 = vector.broadcast %cst_29 : f32 to vector<8x1xf32>
    %76 = arith.divf %74, %75 : vector<8x1xf32>
    %cst_30 = arith.constant 9.99999997E-7 : f32
    %77 = vector.broadcast %cst_30 : f32 to vector<8x1xf32>
    %78 = arith.addf %76, %77 : vector<8x1xf32>
    %79 = math.rsqrt %78 : vector<8x1xf32>
    %80 = vector.broadcast %79 : vector<8x1xf32> to vector<8x32xf32>
    %81 = arith.mulf %71, %80 : vector<8x32xf32>
    %82 = arith.truncf %81 : vector<8x32xf32> to vector<8x32xbf16>
    %c0_31 = arith.constant 0 : index
    %c0_32 = arith.constant 0 : index
    %83 = vector.load %arg3[%c0_31, %c0_32] : memref<32x128xbf16, #tpu.memory_space<vmem>>, vector<32x128xbf16>
    %cst_33 = arith.constant dense<0.000000e+00> : vector<8x128xf32>
    %84 = tpu.matmul %82, %83, %cst_33 {dimension_numbers = #tpu.dot_dimension_numbers<[1], [0], [0], [1], [0, 0, 1, 1], [], []>} : vector<8x32xbf16>, vector<32x128xbf16>, vector<8x128xf32> -> vector<8x128xf32>
    %85 = vector.extract_strided_slice %84 {offsets = [0, 0], sizes = [8, 64], strides = [1, 1]} : vector<8x128xf32> to vector<8x64xf32>
    %86 = vector.extract_strided_slice %84 {offsets = [0, 64], sizes = [8, 64], strides = [1, 1]} : vector<8x128xf32> to vector<8x64xf32>
    %87 = arith.negf %85 : vector<8x64xf32>
    %88 = math.exp %87 : vector<8x64xf32>
    %cst_34 = arith.constant 1.000000e+00 : f32
    %89 = vector.broadcast %cst_34 : f32 to vector<8x64xf32>
    %90 = arith.addf %89, %88 : vector<8x64xf32>
    %91 = arith.divf %89, %90 : vector<8x64xf32>
    %92 = arith.mulf %85, %91 : vector<8x64xf32>
    %93 = arith.mulf %92, %86 : vector<8x64xf32>
    %94 = arith.truncf %93 : vector<8x64xf32> to vector<8x64xbf16>
    %cst_35 = arith.constant dense<0.000000e+00> : vector<8x32xf32>
    %95 = tpu.matmul %94, %25, %cst_35 {dimension_numbers = #tpu.dot_dimension_numbers<[1], [0], [0], [1], [0, 0, 1, 1], [], []>} : vector<8x64xbf16>, vector<64x32xbf16>, vector<8x32xf32> -> vector<8x32xf32>
    %96 = arith.addf %71, %95 : vector<8x32xf32>
    %c0_36 = arith.constant 0 : index
    %c0_37 = arith.constant 0 : index
    %97 = vector.load %arg5[%c0_36, %c0_37] : memref<8x32xf32, #tpu.memory_space<vmem>>, vector<8x32xf32>
    tpu.vector_store %arg5[%c0_36, %c0_37], %96 {strides = array<i32>} : memref<8x32xf32, #tpu.memory_space<vmem>>, vector<8x32xf32>,
    return
  }
}

</mosaic_0001>

<llo_original>
// kernel: transformer_block.1
$region0: #{transformer_block.1}
  #allocation0 [shape = 'u32[]', space=smem, size = 0x4, offset = 0x4, fixed_abs, tag = 'smem constant byte address 0x4 - core index']
  #allocation1 [shape = 'u32[144,128]{1,0:T(1,128)}', space=vmem, size = 0x12000, scoped, tag = 'internal scratch']
  #allocation2 [shape = 'f32[8,64]{1,0:T(8,128)}', space=vmem, size = 0x1000, scoped, tag = 'scratch operand']
  %s0 = inlined_call_operand.vmem [shape: f32[8,32], index: 0, kind: input, shape index: {}]
  %s1 = inlined_call_operand.vmem [shape: f32[8,256], index: 1, kind: input, shape index: {}]
  %s2 = inlined_call_operand.vmem [shape: bf16[32,256], index: 2, kind: input, shape index: {}]
  %s3 = inlined_call_operand.vmem [shape: bf16[32,128], index: 3, kind: input, shape index: {}]
  %s4 = inlined_call_operand.vmem [shape: bf16[128,32], index: 4, kind: input, shape index: {}]
  %s5 = inlined_call_operand.hbm [shape: f32[8,32], index: 5, kind: output, shape index: {}]
  %s6 = sld [smem:[#allocation0]]
  $region30: #{transformer_block.1} parent=0
    _
  %s8 = ssub.s32 1, %s6
  %s9 = scalar_select 0, %s8, %s6
  $region1: #{transformer_block.1} parent=0
    #allocation3 [shape = 'u8[4096]{0}', space=vmem, size = 0x1000, scoped, tag = 'output window, operand 0, single buffered']
    #allocation4 [shape = 's32[1]{0}', space=sflag, size = 0x4, scoped, tag = 'scoped memory for transformer_block.1']
    %10 = vsyncpa [#allocation4], 0
    // Predicated region
    $region2: #{transformer_block.1} parent=1 // pred_check
      _
    $region3: #{transformer_block.1} parent=1 // pred_check_branch
      %12 = sbr.rel (0) target = $region5
    $region4: #{transformer_block.1} parent=1 // pred_region
      _
    $region5: #{transformer_block.1} parent=1 // pred_fallthru
      _
    // Predicated region
    $region6: #{transformer_block.1} parent=1 // pred_check
      _
    $region7: #{transformer_block.1} parent=1 // pred_check_branch
      %14 = sbr.rel (0) target = $region9
    $region8: #{transformer_block.1} parent=1 // pred_region
      _
    $region9: #{transformer_block.1} parent=1 // pred_fallthru
      _
    // Predicated region
    $region10: #{transformer_block.1} parent=1 // pred_check
      _
    $region11: #{transformer_block.1} parent=1 // pred_check_branch
      %16 = sbr.rel (0) target = $region13
    $region12: #{transformer_block.1} parent=1 // pred_region
      _
    $region13: #{transformer_block.1} parent=1 // pred_fallthru
      _
    // Predicated region
    $region14: #{transformer_block.1} parent=1 // pred_check
      _
    $region15: #{transformer_block.1} parent=1 // pred_check_branch
      %18 = sbr.rel (0) target = $region17
    $region16: #{transformer_block.1} parent=1 // pred_region
      _
    $region17: #{transformer_block.1} parent=1 // pred_fallthru
      _
    // Predicated region
    $region18: #{transformer_block.1} parent=1 // pred_check
      _
    $region19: #{transformer_block.1} parent=1 // pred_check_branch
      %20 = sbr.rel (0) target = $region21
    $region20: #{transformer_block.1} parent=1 // pred_region
      _
    $region21: #{transformer_block.1} parent=1 // pred_fallthru
      _
    %v22 = vld [vmem:[%s0] sm:$0xff]
    %v23 = vmul.f32 %v22, %v22
    %vm24 = vcmask 261120
    %v25 = vsel %vm24, %v23, 0.0
    %26 = vadd.xlane.f32.xlu0 %v25
    %v27 = vpop.xlane.xlu0 %26
    %v28 = vrcp.pop 32.0
    %v29 = vmul.f32 %v27, %v28
    %v30 = vadd.f32 %v29, 1e-06
    %v31 = vrsqrt.pop %v30
    %v32 = vmul.f32 %v22, %v31
    %v33 = vpack.c.bf16 %v32, %v32
    %v34 = vld [vmem:[%s2] sm:$0xff]
    %v35 = vld [vmem:[%s2 + $0x8] sm:$0xff]
    %v36 = vld [vmem:[%s2 + $0x10] sm:$0xff]
    %v37 = vld [vmem:[%s2 + $0x18] sm:$0xff]
    %v42 = vunpack.c.l.b16 %v34
    %v43 = vunpack.c.h.b16 %v34
    %v44 = vunpack.c.l.b16 %v35
    %v45 = vunpack.c.h.b16 %v35
    %v46 = vunpack.c.l.b16 %v36
    %v47 = vunpack.c.h.b16 %v36
    %v48 = vunpack.c.l.b16 %v37
    %v49 = vunpack.c.h.b16 %v37
    %v50 = vpack.c.b16 %v44, %v42
    %v51 = vpack.c.b16 %v45, %v43
    %v52 = vpack.c.b16 %v48, %v46
    %v53 = vpack.c.b16 %v49, %v47
    %v59 = vsel %vm24, %v33, 0
    %61 = vmatprep.subr.bf16.mxu0 0
    %62 = vmatpush1.bf16.msra.mxu0 0
    %63 = vmatprep.subr.bf16.mxu0 0
    %64 = vmatpush1.bf16.msra.mxu0 0
    %65 = vmatprep.subr.bf16.mxu0 0
    %66 = vmatpush1.bf16.msra.mxu0 0
    %67 = vmatprep.subr.bf16.mxu0 0
    %68 = vmatpush1.bf16.msra.mxu0 0
    %69 = vmatprep.subr.bf16.mxu0 0
    %70 = vmatpush1.bf16.msra.mxu0 0
    %71 = vmatprep.subr.bf16.mxu0 0
    %72 = vmatpush1.bf16.msra.mxu0 0
    %73 = vmatprep.subr.bf16.mxu0 %v53
    %74 = vmatpush1.bf16.msra.mxu0 %v52
    %75 = vmatprep.subr.bf16.mxu0 %v51
    %76 = vmatpush1.bf16.msra.mxu0 %v50
    %77 = vmatprep.subr.bf16.mxu0 0
    %78 = vmatpush2.bf16.msra.mxu0 0
    %79 = vmatprep.subr.bf16.mxu0 0
    %80 = vmatpush2.bf16.msra.mxu0 0
    %81 = vmatprep.subr.bf16.mxu0 0
    %82 = vmatpush2.bf16.msra.mxu0 0
    %83 = vmatprep.subr.bf16.mxu0 0
    %84 = vmatpush2.bf16.msra.mxu0 0
    %85 = vmatprep.subr.bf16.mxu0 0
    %86 = vmatpush2.bf16.msra.mxu0 0
    %87 = vmatprep.subr.bf16.mxu0 0
    %88 = vmatpush2.bf16.msra.mxu0 0
    %89 = vmatprep.subr.bf16.mxu0 0
    %90 = vmatpush2.bf16.msra.mxu0 0
    %91 = vmatprep.subr.bf16.mxu0 0
    %92 = vmatpush2.bf16.msra.mxu0 0
    %93 = vmatprep.mubr.bf16.mxu0 0
    %94 = vmatmul.mubr.bf16.gmra.mxu0 %v59
    %v95 = vpop.f32.mrf.mxu0
    %v96 = vadd.f32 0.0, %v95
    %v97 = vpop.f32.mrf.mxu0
    %v98 = vadd.f32 0.0, %v97
    %v99 = vpop.f32.mrf.mxu0
    %v100 = vpop.f32.mrf.mxu0
    %101 = vdwg.mxu0
    %v102 = vld [vmem:[%s1] sm:$0xff]
    %v103 = vmul.f32 %v96, %v102
    %v104 = vld [vmem:[%s1 + $0x8] sm:$0xff]
    %v105 = vmul.f32 %v98, %v104
    %v106 = vadd.f32 %v103, %v105
    %v107 = vld [vmem:[%s4] sm:$0xf]
    %v108 = vld [vmem:[%s4 + $0x4] sm:$0xf]
    %v109 = vld [vmem:[%s4 + $0x8] sm:$0xf]
    %v110 = vld [vmem:[%s4 + $0xc] sm:$0xf]
    %v111 = vld [vmem:[%s4 + $0x10] sm:$0xf]
    %v112 = vld [vmem:[%s4 + $0x14] sm:$0xf]
    %v113 = vld [vmem:[%s4 + $0x18] sm:$0xf]
    %v114 = vld [vmem:[%s4 + $0x1c] sm:$0xf]
    %v115 = vld [vmem:[%s4 + $0x20] sm:$0xf]
    %v116 = vld [vmem:[%s4 + $0x24] sm:$0xf]
    %v117 = vld [vmem:[%s4 + $0x28] sm:$0xf]
    %v118 = vld [vmem:[%s4 + $0x2c] sm:$0xf]
    %v119 = vld [vmem:[%s4 + $0x30] sm:$0xf]
    %v120 = vld [vmem:[%s4 + $0x34] sm:$0xf]
    %v121 = vld [vmem:[%s4 + $0x38] sm:$0xf]
    %v122 = vld [vmem:[%s4 + $0x3c] sm:$0xf]
    %124 = vrot.lane.b32.xlu0 %v106, 112
    %v125 = vpop.permute.xlu0 %124
    %126 = vrot.lane.b32.xlu0 %v106, 64
    %v127 = vpop.permute.xlu0 %126
    %vm128 = vcmask 130048
    %v129 = vsel %vm128, %v106, 0
    %v131 = vsel %vm128, %v125, 0
    %v133 = vsel %vm128, %v127, 0
    %135 = vmatprep.subr.mxu0 0.0
    %136 = vmatpush1.xpose.msra.mxu0 0.0
    %137 = vmatprep.subr.mxu0 0.0
    %138 = vmatpush1.xpose.msra.mxu0 0.0
    %139 = vmatprep.subr.mxu0 0.0
    %140 = vmatpush1.xpose.msra.mxu0 0.0
    %141 = vmatprep.subr.mxu0 0.0
    %142 = vmatpush1.xpose.msra.mxu0 0.0
    %143 = vmatprep.subr.mxu0 0.0
    %144 = vmatpush1.xpose.msra.mxu0 0.0
    %145 = vmatprep.subr.mxu0 0.0
    %146 = vmatpush1.xpose.msra.mxu0 0.0
    %147 = vmatprep.subr.mxu0 0.0
    %148 = vmatpush1.xpose.msra.mxu0 0.0
    %149 = vmatprep.subr.mxu0 0.0
    %150 = vmatpush1.xpose.msra.mxu0 0.0
    %151 = vmatprep.subr.mxu0 0.0
    %152 = vmatpush1.xpose.msra.mxu0 0.0
    %153 = vmatprep.subr.mxu0 0.0
    %154 = vmatpush1.xpose.msra.mxu0 0.0
    %155 = vmatprep.subr.mxu0 0.0
    %156 = vmatpush1.xpose.msra.mxu0 0.0
    %157 = vmatprep.subr.mxu0 0.0
    %158 = vmatpush1.xpose.msra.mxu0 0.0
    %159 = vmatprep.subr.mxu0 0.0
    %160 = vmatpush1.xpose.msra.mxu0 0.0
    %161 = vmatprep.subr.mxu0 0.0
    %162 = vmatpush1.xpose.msra.mxu0 0.0
    %163 = vmatprep.subr.mxu0 0.0
    %164 = vmatpush1.xpose.msra.mxu0 0.0
    %165 = vmatprep.subr.mxu0 0.0
    %166 = vmatpush1.xpose.msra.mxu0 %v133
    %167 = vmatprep.subr.mxu0 0.0
    %168 = vmatpush2.xpose.msra.mxu0 0.0
    %169 = vmatprep.subr.mxu0 0.0
    %170 = vmatpush2.xpose.msra.mxu0 0.0
    %171 = vmatprep.subr.mxu0 0.0
    %172 = vmatpush2.xpose.msra.mxu0 0.0
    %173 = vmatprep.subr.mxu0 0.0
    %174 = vmatpush2.xpose.msra.mxu0 0.0
    %175 = vmatprep.subr.mxu0 0.0
    %176 = vmatpush2.xpose.msra.mxu0 0.0
    %177 = vmatprep.subr.mxu0 0.0
    %178 = vmatpush2.xpose.msra.mxu0 0.0
    %179 = vmatprep.subr.mxu0 0.0
    %180 = vmatpush2.xpose.msra.mxu0 0.0
    %181 = vmatprep.subr.mxu0 0.0
    %182 = vmatpush2.xpose.msra.mxu0 0.0
    %183 = vmatprep.subr.mxu0 0.0
    %184 = vmatpush2.xpose.msra.mxu0 0.0
    %185 = vmatprep.subr.mxu0 0.0
    %186 = vmatpush2.xpose.msra.mxu0 0.0
    %187 = vmatprep.subr.mxu0 0.0
    %188 = vmatpush2.xpose.msra.mxu0 0.0
    %189 = vmatprep.subr.mxu0 0.0
    %190 = vmatpush2.xpose.msra.mxu0 0.0
    %191 = vmatprep.subr.mxu0 0.0
    %192 = vmatpush2.xpose.msra.mxu0 0.0
    %193 = vmatprep.subr.mxu0 0.0
    %194 = vmatpush2.xpose.msra.mxu0 0.0
    %195 = vmatprep.subr.mxu0 0.0
    %196 = vmatpush2.xpose.msra.mxu0 0.0
    %197 = vmatprep.subr.mxu0 0.0
    %198 = vmatpush2.xpose.msra.mxu0 0.0
    %199 = vmatprep.mubr.f32.mxu0 0.0
    %200 = vmatmul.mubr.f32.gmra.mxu0 %v129
    %v201 = vpop.f32.mrf.mxu0
    %v202 = vadd.f32 0.0, %v201
    %v203 = vpop.f32.mrf.mxu0
    %204 = vmatprep.mubr.f32.mxu0 0.0
    %205 = vmatmul.mubr.f32.gmra.mxu0 %v131
    %v206 = vpop.f32.mrf.mxu0
    %v207 = vadd.f32 0.0, %v206
    %v208 = vpop.f32.mrf.mxu0
    %209 = vdwg.mxu0
    %vm210 = vcmask 64512
    %v211 = vsel %vm210, %v202, -inf
    %212 = vmax.xlane.f32.xlu0 %v211
    %v213 = vpop.xlane.xlu0 %212
    %v214 = vsel %vm210, %v207, -inf
    %215 = vmax.xlane.f32.xlu0 %v214
    %v216 = vpop.xlane.xlu0 %215
    %v217 = vsub.f32 %v202, %v213
    %v218 = vsub.f32 %v207, %v216
    %v219 = vmul.f32 %v217, 1.442695
    %v220 = vpow.pop %v219
    %v221 = vmul.f32 %v218, 1.442695
    %v222 = vpow.pop %v221
    %v223 = vsel %vm210, %v220, 0.0
    %224 = vadd.xlane.f32.xlu0 %v223
    %v225 = vpop.xlane.xlu0 %224
    %v226 = vsel %vm210, %v222, 0.0
    %227 = vadd.xlane.f32.xlu0 %v226
    %v228 = vpop.xlane.xlu0 %227
    %v229 = vrcp.pop %v225
    %v230 = vrcp.pop %v228
    %v231 = vmul.f32 %v220, %v229
    %v232 = vmul.f32 %v222, %v230
    %233 = vrot.lane.b32.xlu0 %v106, 32
    %v234 = vpop.permute.xlu0 %233
    %v237 = vsel %vm210, %v231, 0
    %v240 = vsel %vm210, %v232, 0
    %242 = vmatprep.subr.mxu0 0.0
    %243 = vmatpush1.msra.mxu0 0.0
    %244 = vmatprep.subr.mxu0 0.0
    %245 = vmatpush1.msra.mxu0 0.0
    %246 = vmatprep.subr.mxu0 0.0
    %247 = vmatpush1.msra.mxu0 0.0
    %248 = vmatprep.subr.mxu0 0.0
    %249 = vmatpush1.msra.mxu0 0.0
    %250 = vmatprep.subr.mxu0 0.0
    %251 = vmatpush1.msra.mxu0 0.0
    %252 = vmatprep.subr.mxu0 0.0
    %253 = vmatpush1.msra.mxu0 0.0
    %254 = vmatprep.subr.mxu0 0.0
    %255 = vmatpush1.msra.mxu0 0.0
    %256 = vmatprep.subr.mxu0 0.0
    %257 = vmatpush1.msra.mxu0 0.0
    %258 = vmatprep.subr.mxu0 0.0
    %259 = vmatpush1.msra.mxu0 0.0
    %260 = vmatprep.subr.mxu0 0.0
    %261 = vmatpush1.msra.mxu0 0.0
    %262 = vmatprep.subr.mxu0 0.0
    %263 = vmatpush1.msra.mxu0 0.0
    %264 = vmatprep.subr.mxu0 0.0
    %265 = vmatpush1.msra.mxu0 0.0
    %266 = vmatprep.subr.mxu0 0.0
    %267 = vmatpush1.msra.mxu0 0.0
    %268 = vmatprep.subr.mxu0 0.0
    %269 = vmatpush1.msra.mxu0 0.0
    %270 = vmatprep.subr.mxu0 0.0
    %271 = vmatpush1.msra.mxu0 0.0
    %272 = vmatprep.subr.mxu0 0.0
    %273 = vmatpush1.msra.mxu0 %v234
    %274 = vmatprep.subr.mxu0 0.0
    %275 = vmatpush2.msra.mxu0 0.0
    %276 = vmatprep.subr.mxu0 0.0
    %277 = vmatpush2.msra.mxu0 0.0
    %278 = vmatprep.subr.mxu0 0.0
    %279 = vmatpush2.msra.mxu0 0.0
    %280 = vmatprep.subr.mxu0 0.0
    %281 = vmatpush2.msra.mxu0 0.0
    %282 = vmatprep.subr.mxu0 0.0
    %283 = vmatpush2.msra.mxu0 0.0
    %284 = vmatprep.subr.mxu0 0.0
    %285 = vmatpush2.msra.mxu0 0.0
    %286 = vmatprep.subr.mxu0 0.0
    %287 = vmatpush2.msra.mxu0 0.0
    %288 = vmatprep.subr.mxu0 0.0
    %289 = vmatpush2.msra.mxu0 0.0
    %290 = vmatprep.subr.mxu0 0.0
    %291 = vmatpush2.msra.mxu0 0.0
    %292 = vmatprep.subr.mxu0 0.0
    %293 = vmatpush2.msra.mxu0 0.0
    %294 = vmatprep.subr.mxu0 0.0
    %295 = vmatpush2.msra.mxu0 0.0
    %296 = vmatprep.subr.mxu0 0.0
    %297 = vmatpush2.msra.mxu0 0.0
    %298 = vmatprep.subr.mxu0 0.0
    %299 = vmatpush2.msra.mxu0 0.0
    %300 = vmatprep.subr.mxu0 0.0
    %301 = vmatpush2.msra.mxu0 0.0
    %302 = vmatprep.subr.mxu0 0.0
    %303 = vmatpush2.msra.mxu0 0.0
    %304 = vmatprep.subr.mxu0 0.0
    %305 = vmatpush2.msra.mxu0 0.0
    %306 = vmatprep.mubr.f32.mxu0 0.0
    %307 = vmatmul.mubr.f32.gmra.mxu0 %v237
    %v308 = vpop.f32.mrf.mxu0
    %v309 = vadd.f32 0.0, %v308
    %v310 = vpop.f32.mrf.mxu0
    %311 = vmatprep.mubr.f32.mxu0 0.0
    %312 = vmatmul.mubr.f32.gmra.mxu0 %v240
    %v313 = vpop.f32.mrf.mxu0
    %v314 = vadd.f32 0.0, %v313
    %v315 = vpop.f32.mrf.mxu0
    %316 = vdwg.mxu0
    %317 = vst.msk [vmem:[#allocation2] sm:$0xff] %vm128, %v309
    %319 = vrot.lane.b32.xlu0 %v314, 16
    %v320 = vpop.permute.xlu0 %319
    %vm322 = vcmask 261248
    %323 = vst.msk [vmem:[#allocation2] sm:$0xff] %vm322, %v320
    %324 = vrot.lane.b32.xlu0 %v106, 96
    %v325 = vpop.permute.xlu0 %324
    %326 = vrot.lane.b32.xlu0 %v125, 96
    %v327 = vpop.permute.xlu0 %326
    %328 = vrot.lane.b32.xlu0 %v106, 48
    %v329 = vpop.permute.xlu0 %328
    %v330 = vsel %vm128, %v325, 0
    %v332 = vsel %vm128, %v327, 0
    %v334 = vsel %vm128, %v329, 0
    %336 = vmatprep.subr.mxu0 0.0
    %337 = vmatpush1.xpose.msra.mxu0 0.0
    %338 = vmatprep.subr.mxu0 0.0
    %339 = vmatpush1.xpose.msra.mxu0 0.0
    %340 = vmatprep.subr.mxu0 0.0
    %341 = vmatpush1.xpose.msra.mxu0 0.0
    %342 = vmatprep.subr.mxu0 0.0
    %343 = vmatpush1.xpose.msra.mxu0 0.0
    %344 = vmatprep.subr.mxu0 0.0
    %345 = vmatpush1.xpose.msra.mxu0 0.0
    %346 = vmatprep.subr.mxu0 0.0
    %347 = vmatpush1.xpose.msra.mxu0 0.0
    %348 = vmatprep.subr.mxu0 0.0
    %349 = vmatpush1.xpose.msra.mxu0 0.0
    %350 = vmatprep.subr.mxu0 0.0
    %351 = vmatpush1.xpose.msra.mxu0 0.0
    %352 = vmatprep.subr.mxu0 0.0
    %353 = vmatpush1.xpose.msra.mxu0 0.0
    %354 = vmatprep.subr.mxu0 0.0
    %355 = vmatpush1.xpose.msra.mxu0 0.0
    %356 = vmatprep.subr.mxu0 0.0
    %357 = vmatpush1.xpose.msra.mxu0 0.0
    %358 = vmatprep.subr.mxu0 0.0
    %359 = vmatpush1.xpose.msra.mxu0 0.0
    %360 = vmatprep.subr.mxu0 0.0
    %361 = vmatpush1.xpose.msra.mxu0 0.0
    %362 = vmatprep.subr.mxu0 0.0
    %363 = vmatpush1.xpose.msra.mxu0 0.0
    %364 = vmatprep.subr.mxu0 0.0
    %365 = vmatpush1.xpose.msra.mxu0 0.0
    %366 = vmatprep.subr.mxu0 0.0
    %367 = vmatpush1.xpose.msra.mxu0 %v334
    %368 = vmatprep.subr.mxu0 0.0
    %369 = vmatpush2.xpose.msra.mxu0 0.0
    %370 = vmatprep.subr.mxu0 0.0
    %371 = vmatpush2.xpose.msra.mxu0 0.0
    %372 = vmatprep.subr.mxu0 0.0
    %373 = vmatpush2.xpose.msra.mxu0 0.0
    %374 = vmatprep.subr.mxu0 0.0
    %375 = vmatpush2.xpose.msra.mxu0 0.0
    %376 = vmatprep.subr.mxu0 0.0
    %377 = vmatpush2.xpose.msra.mxu0 0.0
    %378 = vmatprep.subr.mxu0 0.0
    %379 = vmatpush2.xpose.msra.mxu0 0.0
    %380 = vmatprep.subr.mxu0 0.0
    %381 = vmatpush2.xpose.msra.mxu0 0.0
    %382 = vmatprep.subr.mxu0 0.0
    %383 = vmatpush2.xpose.msra.mxu0 0.0
    %384 = vmatprep.subr.mxu0 0.0
    %385 = vmatpush2.xpose.msra.mxu0 0.0
    %386 = vmatprep.subr.mxu0 0.0
    %387 = vmatpush2.xpose.msra.mxu0 0.0
    %388 = vmatprep.subr.mxu0 0.0
    %389 = vmatpush2.xpose.msra.mxu0 0.0
    %390 = vmatprep.subr.mxu0 0.0
    %391 = vmatpush2.xpose.msra.mxu0 0.0
    %392 = vmatprep.subr.mxu0 0.0
    %393 = vmatpush2.xpose.msra.mxu0 0.0
    %394 = vmatprep.subr.mxu0 0.0
    %395 = vmatpush2.xpose.msra.mxu0 0.0
    %396 = vmatprep.subr.mxu0 0.0
    %397 = vmatpush2.xpose.msra.mxu0 0.0
    %398 = vmatprep.subr.mxu0 0.0
    %399 = vmatpush2.xpose.msra.mxu0 0.0
    %400 = vmatprep.mubr.f32.mxu0 0.0
    %401 = vmatmul.mubr.f32.gmra.mxu0 %v330
    %v402 = vpop.f32.mrf.mxu0
    %v403 = vadd.f32 0.0, %v402
    %v404 = vpop.f32.mrf.mxu0
    %405 = vmatprep.mubr.f32.mxu0 0.0
    %406 = vmatmul.mubr.f32.gmra.mxu0 %v332
    %v407 = vpop.f32.mrf.mxu0
    %v408 = vadd.f32 0.0, %v407
    %v409 = vpop.f32.mrf.mxu0
    %410 = vdwg.mxu0
    %v411 = vsel %vm210, %v403, -inf
    %412 = vmax.xlane.f32.xlu0 %v411
    %v413 = vpop.xlane.xlu0 %412
    %v414 = vsel %vm210, %v408, -inf
    %415 = vmax.xlane.f32.xlu0 %v414
    %v416 = vpop.xlane.xlu0 %415
    %v417 = vsub.f32 %v403, %v413
    %v418 = vsub.f32 %v408, %v416
    %v419 = vmul.f32 %v417, 1.442695
    %v420 = vpow.pop %v419
    %v421 = vmul.f32 %v418, 1.442695
    %v422 = vpow.pop %v421
    %v423 = vsel %vm210, %v420, 0.0
    %424 = vadd.xlane.f32.xlu0 %v423
    %v425 = vpop.xlane.xlu0 %424
    %v426 = vsel %vm210, %v422, 0.0
    %427 = vadd.xlane.f32.xlu0 %v426
    %v428 = vpop.xlane.xlu0 %427
    %v429 = vrcp.pop %v425
    %v430 = vrcp.pop %v428
    %v431 = vmul.f32 %v420, %v429
    %v432 = vmul.f32 %v422, %v430
    %433 = vrot.lane.b32.xlu0 %v106, 16
    %v434 = vpop.permute.xlu0 %433
    %v437 = vsel %vm210, %v431, 0
    %v440 = vsel %vm210, %v432, 0
    %442 = vmatprep.subr.mxu0 0.0
    %443 = vmatpush1.msra.mxu0 0.0
    %444 = vmatprep.subr.mxu0 0.0
    %445 = vmatpush1.msra.mxu0 0.0
    %446 = vmatprep.subr.mxu0 0.0
    %447 = vmatpush1.msra.mxu0 0.0
    %448 = vmatprep.subr.mxu0 0.0
    %449 = vmatpush1.msra.mxu0 0.0
    %450 = vmatprep.subr.mxu0 0.0
    %451 = vmatpush1.msra.mxu0 0.0
    %452 = vmatprep.subr.mxu0 0.0
    %453 = vmatpush1.msra.mxu0 0.0
    %454 = vmatprep.subr.mxu0 0.0
    %455 = vmatpush1.msra.mxu0 0.0
    %456 = vmatprep.subr.mxu0 0.0
    %457 = vmatpush1.msra.mxu0 0.0
    %458 = vmatprep.subr.mxu0 0.0
    %459 = vmatpush1.msra.mxu0 0.0
    %460 = vmatprep.subr.mxu0 0.0
    %461 = vmatpush1.msra.mxu0 0.0
    %462 = vmatprep.subr.mxu0 0.0
    %463 = vmatpush1.msra.mxu0 0.0
    %464 = vmatprep.subr.mxu0 0.0
    %465 = vmatpush1.msra.mxu0 0.0
    %466 = vmatprep.subr.mxu0 0.0
    %467 = vmatpush1.msra.mxu0 0.0
    %468 = vmatprep.subr.mxu0 0.0
    %469 = vmatpush1.msra.mxu0 0.0
    %470 = vmatprep.subr.mxu0 0.0
    %471 = vmatpush1.msra.mxu0 0.0
    %472 = vmatprep.subr.mxu0 0.0
    %473 = vmatpush1.msra.mxu0 %v434
    %474 = vmatprep.subr.mxu0 0.0
    %475 = vmatpush2.msra.mxu0 0.0
    %476 = vmatprep.subr.mxu0 0.0
    %477 = vmatpush2.msra.mxu0 0.0
    %478 = vmatprep.subr.mxu0 0.0
    %479 = vmatpush2.msra.mxu0 0.0
    %480 = vmatprep.subr.mxu0 0.0
    %481 = vmatpush2.msra.mxu0 0.0
    %482 = vmatprep.subr.mxu0 0.0
    %483 = vmatpush2.msra.mxu0 0.0
    %484 = vmatprep.subr.mxu0 0.0
    %485 = vmatpush2.msra.mxu0 0.0
    %486 = vmatprep.subr.mxu0 0.0
    %487 = vmatpush2.msra.mxu0 0.0
    %488 = vmatprep.subr.mxu0 0.0
    %489 = vmatpush2.msra.mxu0 0.0
    %490 = vmatprep.subr.mxu0 0.0
    %491 = vmatpush2.msra.mxu0 0.0
    %492 = vmatprep.subr.mxu0 0.0
    %493 = vmatpush2.msra.mxu0 0.0
    %494 = vmatprep.subr.mxu0 0.0
    %495 = vmatpush2.msra.mxu0 0.0
    %496 = vmatprep.subr.mxu0 0.0
    %497 = vmatpush2.msra.mxu0 0.0
    %498 = vmatprep.subr.mxu0 0.0
    %499 = vmatpush2.msra.mxu0 0.0
    %500 = vmatprep.subr.mxu0 0.0
    %501 = vmatpush2.msra.mxu0 0.0
    %502 = vmatprep.subr.mxu0 0.0
    %503 = vmatpush2.msra.mxu0 0.0
    %504 = vmatprep.subr.mxu0 0.0
    %505 = vmatpush2.msra.mxu0 0.0
    %506 = vmatprep.mubr.f32.mxu0 0.0
    %507 = vmatmul.mubr.f32.gmra.mxu0 %v437
    %v508 = vpop.f32.mrf.mxu0
    %v509 = vadd.f32 0.0, %v508
    %v510 = vpop.f32.mrf.mxu0
    %511 = vmatprep.mubr.f32.mxu0 0.0
    %512 = vmatmul.mubr.f32.gmra.mxu0 %v440
    %v513 = vpop.f32.mrf.mxu0
    %v514 = vadd.f32 0.0, %v513
    %v515 = vpop.f32.mrf.mxu0
    %516 = vdwg.mxu0
    %518 = vrot.lane.b32.xlu0 %v509, 32
    %v519 = vpop.permute.xlu0 %518
    %vm521 = vcmask 392448
    %522 = vst.msk [vmem:[#allocation2] sm:$0xff] %vm521, %v519
    %524 = vrot.lane.b32.xlu0 %v514, 48
    %v525 = vpop.permute.xlu0 %524
    %vm527 = vcmask 523648
    %528 = vst.msk [vmem:[#allocation2] sm:$0xff] %vm527, %v525
    %v529 = vld [vmem:[#allocation2] sm:$0xff]
    %v530 = vpack.c.bf16 %v529, %v529
    %v539 = vunpack.c.l.b16 %v107
    %v540 = vunpack.c.l.b16 %v108
    %v541 = vunpack.c.l.b16 %v109
    %v542 = vunpack.c.l.b16 %v110
    %v543 = vunpack.c.l.b16 %v111
    %v544 = vunpack.c.l.b16 %v112
    %v545 = vunpack.c.l.b16 %v113
    %v546 = vunpack.c.l.b16 %v114
    %v547 = vpack.c.b16 %v540, %v539
    %v548 = vpack.c.b16 %v542, %v541
    %v549 = vpack.c.b16 %v544, %v543
    %v550 = vpack.c.b16 %v546, %v545
    %vm555 = vcmask 523264
    %v557 = vsel %vm555, %v530, 0
    %559 = vmatprep.subr.bf16.mxu0 0
    %560 = vmatpush1.bf16.msra.mxu0 0
    %561 = vmatprep.subr.bf16.mxu0 0
    %562 = vmatpush1.bf16.msra.mxu0 0
    %563 = vmatprep.subr.bf16.mxu0 0
    %564 = vmatpush1.bf16.msra.mxu0 0
    %565 = vmatprep.subr.bf16.mxu0 0
    %566 = vmatpush1.bf16.msra.mxu0 0
    %567 = vmatprep.subr.bf16.mxu0 0
    %568 = vmatpush1.bf16.msra.mxu0 %v550
    %569 = vmatprep.subr.bf16.mxu0 0
    %570 = vmatpush1.bf16.msra.mxu0 %v549
    %571 = vmatprep.subr.bf16.mxu0 0
    %572 = vmatpush1.bf16.msra.mxu0 %v548
    %573 = vmatprep.subr.bf16.mxu0 0
    %574 = vmatpush1.bf16.msra.mxu0 %v547
    %575 = vmatprep.subr.bf16.mxu0 0
    %576 = vmatpush2.bf16.msra.mxu0 0
    %577 = vmatprep.subr.bf16.mxu0 0
    %578 = vmatpush2.bf16.msra.mxu0 0
    %579 = vmatprep.subr.bf16.mxu0 0
    %580 = vmatpush2.bf16.msra.mxu0 0
    %581 = vmatprep.subr.bf16.mxu0 0
    %582 = vmatpush2.bf16.msra.mxu0 0
    %583 = vmatprep.subr.bf16.mxu0 0
    %584 = vmatpush2.bf16.msra.mxu0 0
    %585 = vmatprep.subr.bf16.mxu0 0
    %586 = vmatpush2.bf16.msra.mxu0 0
    %587 = vmatprep.subr.bf16.mxu0 0
    %588 = vmatpush2.bf16.msra.mxu0 0
    %589 = vmatprep.subr.bf16.mxu0 0
    %590 = vmatpush2.bf16.msra.mxu0 0
    %591 = vmatprep.mubr.bf16.mxu0 0
    %592 = vmatmul.mubr.bf16.gmra.mxu0 %v557
    %v593 = vpop.f32.mrf.mxu0
    %v594 = vadd.f32 0.0, %v593
    %v595 = vpop.f32.mrf.mxu0
    %v596 = vpop.f32.mrf.mxu0
    %v597 = vpop.f32.mrf.mxu0
    %598 = vdwg.mxu0
    %v599 = vadd.f32 %v22, %v594
    %v600 = vmul.f32 %v599, %v599
    %v601 = vsel %vm24, %v600, 0.0
    %602 = vadd.xlane.f32.xlu0 %v601
    %v603 = vpop.xlane.xlu0 %602
    %v604 = vmul.f32 %v603, %v28
    %v605 = vadd.f32 %v604, 1e-06
    %v606 = vrsqrt.pop %v605
    %v607 = vmul.f32 %v599, %v606
    %v608 = vpack.c.bf16 %v607, %v607
    %v609 = vld [vmem:[%s3] sm:$0xf]
    %v610 = vld [vmem:[%s3 + $0x4] sm:$0xf]
    %v611 = vld [vmem:[%s3 + $0x8] sm:$0xf]
    %v612 = vld [vmem:[%s3 + $0xc] sm:$0xf]
    %v617 = vunpack.c.l.b16 %v609
    %v618 = vunpack.c.l.b16 %v610
    %v619 = vunpack.c.l.b16 %v611
    %v620 = vunpack.c.l.b16 %v612
    %v621 = vpack.c.b16 %v618, %v617
    %v622 = vpack.c.b16 %v620, %v619
    %v626 = vsel %vm24, %v608, 0
    %628 = vmatprep.subr.bf16.mxu0 0
    %629 = vmatpush1.bf16.msra.mxu0 0
    %630 = vmatprep.subr.bf16.mxu0 0
    %631 = vmatpush1.bf16.msra.mxu0 0
    %632 = vmatprep.subr.bf16.mxu0 0
    %633 = vmatpush1.bf16.msra.mxu0 0
    %634 = vmatprep.subr.bf16.mxu0 0
    %635 = vmatpush1.bf16.msra.mxu0 0
    %636 = vmatprep.subr.bf16.mxu0 0
    %637 = vmatpush1.bf16.msra.mxu0 0
    %638 = vmatprep.subr.bf16.mxu0 0
    %639 = vmatpush1.bf16.msra.mxu0 0
    %640 = vmatprep.subr.bf16.mxu0 0
    %641 = vmatpush1.bf16.msra.mxu0 %v622
    %642 = vmatprep.subr.bf16.mxu0 0
    %643 = vmatpush1.bf16.msra.mxu0 %v621
    %644 = vmatprep.subr.bf16.mxu0 0
    %645 = vmatpush2.bf16.msra.mxu0 0
    %646 = vmatprep.subr.bf16.mxu0 0
    %647 = vmatpush2.bf16.msra.mxu0 0
    %648 = vmatprep.subr.bf16.mxu0 0
    %649 = vmatpush2.bf16.msra.mxu0 0
    %650 = vmatprep.subr.bf16.mxu0 0
    %651 = vmatpush2.bf16.msra.mxu0 0
    %652 = vmatprep.subr.bf16.mxu0 0
    %653 = vmatpush2.bf16.msra.mxu0 0
    %654 = vmatprep.subr.bf16.mxu0 0
    %655 = vmatpush2.bf16.msra.mxu0 0
    %656 = vmatprep.subr.bf16.mxu0 0
    %657 = vmatpush2.bf16.msra.mxu0 0
    %658 = vmatprep.subr.bf16.mxu0 0
    %659 = vmatpush2.bf16.msra.mxu0 0
    %660 = vmatprep.mubr.bf16.mxu0 0
    %661 = vmatmul.mubr.bf16.gmra.mxu0 %v626
    %v662 = vpop.f32.mrf.mxu0
    %v663 = vadd.f32 0.0, %v662
    %v664 = vpop.f32.mrf.mxu0
    %v665 = vpop.f32.mrf.mxu0
    %v666 = vpop.f32.mrf.mxu0
    %667 = vdwg.mxu0
    %v668 = vxor.u32 %v663, 2147483648
    %v669 = vmul.f32 %v668, 1.442695
    %v670 = vpow.pop %v669
    %v671 = vadd.f32 %v670, 1.0
    %v672 = vrcp.pop %v671
    %v673 = vmul.f32 1.0, %v672
    %v674 = vmul.f32 %v663, %v673
    %676 = vrot.lane.b32.xlu0 %v663, 64
    %v677 = vpop.permute.xlu0 %676
    %v679 = vmul.f32 %v674, %v677
    %v680 = vpack.c.bf16 %v679, %v679
    %v689 = vunpack.c.l.b16 %v115
    %v690 = vunpack.c.l.b16 %v116
    %v691 = vunpack.c.l.b16 %v117
    %v692 = vunpack.c.l.b16 %v118
    %v693 = vunpack.c.l.b16 %v119
    %v694 = vunpack.c.l.b16 %v120
    %v695 = vunpack.c.l.b16 %v121
    %v696 = vunpack.c.l.b16 %v122
    %v697 = vpack.c.b16 %v690, %v689
    %v698 = vpack.c.b16 %v692, %v691
    %v699 = vpack.c.b16 %v694, %v693
    %v700 = vpack.c.b16 %v696, %v695
    %v706 = vsel %vm555, %v680, 0
    %708 = vmatprep.subr.bf16.mxu0 0
    %709 = vmatpush1.bf16.msra.mxu0 0
    %710 = vmatprep.subr.bf16.mxu0 0
    %711 = vmatpush1.bf16.msra.mxu0 0
    %712 = vmatprep.subr.bf16.mxu0 0
    %713 = vmatpush1.bf16.msra.mxu0 0
    %714 = vmatprep.subr.bf16.mxu0 0
    %715 = vmatpush1.bf16.msra.mxu0 0
    %716 = vmatprep.subr.bf16.mxu0 0
    %717 = vmatpush1.bf16.msra.mxu0 %v700
    %718 = vmatprep.subr.bf16.mxu0 0
    %719 = vmatpush1.bf16.msra.mxu0 %v699
    %720 = vmatprep.subr.bf16.mxu0 0
    %721 = vmatpush1.bf16.msra.mxu0 %v698
    %722 = vmatprep.subr.bf16.mxu0 0
    %723 = vmatpush1.bf16.msra.mxu0 %v697
    %724 = vmatprep.subr.bf16.mxu0 0
    %725 = vmatpush2.bf16.msra.mxu0 0
    %726 = vmatprep.subr.bf16.mxu0 0
    %727 = vmatpush2.bf16.msra.mxu0 0
    %728 = vmatprep.subr.bf16.mxu0 0
    %729 = vmatpush2.bf16.msra.mxu0 0
    %730 = vmatprep.subr.bf16.mxu0 0
    %731 = vmatpush2.bf16.msra.mxu0 0
    %732 = vmatprep.subr.bf16.mxu0 0
    %733 = vmatpush2.bf16.msra.mxu0 0
    %734 = vmatprep.subr.bf16.mxu0 0
    %735 = vmatpush2.bf16.msra.mxu0 0
    %736 = vmatprep.subr.bf16.mxu0 0
    %737 = vmatpush2.bf16.msra.mxu0 0
    %738 = vmatprep.subr.bf16.mxu0 0
    %739 = vmatpush2.bf16.msra.mxu0 0
    %740 = vmatprep.mubr.bf16.mxu0 0
    %741 = vmatmul.mubr.bf16.gmra.mxu0 %v706
    %v742 = vpop.f32.mrf.mxu0
    %v743 = vadd.f32 0.0, %v742
    %v744 = vpop.f32.mrf.mxu0
    %v745 = vpop.f32.mrf.mxu0
    %v746 = vpop.f32.mrf.mxu0
    %747 = vdwg.mxu0
    %v748 = vadd.f32 %v599, %v743
    %749 = vst.msk [vmem:[#allocation3] sm:$0xff] %vm24, %v748
    // Predicated region
    $region22: #{transformer_block.1} parent=1 // pred_check
      _
    $region23: #{transformer_block.1} parent=1 // pred_check_branch
      %751 = sbr.rel (0) target = $region25
    $region24: #{transformer_block.1} parent=1 // pred_region
      %s753 = ssub.s32 128, 128
      %754 = vsyncadd [#allocation4], %s753
      %s756 = sshll.u32 [#allocation3], 4
      %s757 = int_to_ptr.vmem [resolvable:$true] %s756
      %759 = dma.vmem_to_hbm [thread:$0]  %s757, 128, %s5, [#allocation4]
    $region25: #{transformer_block.1} parent=1 // pred_fallthru
      _
    // Predicated region
    $region26: #{transformer_block.1} parent=1 // pred_check
      _
    $region27: #{transformer_block.1} parent=1 // pred_check_branch
      %761 = sbr.rel (0) target = $region29
    $region28: #{transformer_block.1} parent=1 // pred_region
      %762 = dma.done [#allocation4], 128
    $region29: #{transformer_block.1} parent=1 // pred_fallthru
      _
    %763 = vsyncpa [#allocation4], 1

</llo_original>
